<compile_context>
chip_gen: v7x
topology: tpu7x:2x2x1
jax: 0.10.0
libtpu: 0.0.40
codegen_flags: <defaults>
</compile_context>

<pallas_src>
import functools

import jax
import jax.numpy as jnp
from jax.experimental import pallas as pl
from jax.experimental.pallas import tpu as pltpu


def _round_up(x, m):
    return ((x + m - 1) // m) * m


def _compensated_kernel(x_ref, wT_ref, t_ref, bT_ref, o_ref, acc_ref, *, tk):
    """Tile of  o = x @ W.T + t @ B'.T  (t = x @ A.T precomputed outside)."""
    k = pl.program_id(2)

    @pl.when(k == 0)
    def _init():
        acc_ref[...] = jnp.zeros_like(acc_ref)

    # x is a resident (tm, Hp) slab; take the k-th (tm, tk) chunk.
    xk = x_ref[:, pl.ds(pl.multiple_of(k * tk, tk), tk)]
    acc_ref[...] += jnp.dot(xk, wT_ref[...],
                            preferred_element_type=jnp.float32)          # [tm, tn]

    @pl.when(k == pl.num_programs(2) - 1)
    def _finalize():
        res = jnp.dot(t_ref[...], bT_ref[...],
                      preferred_element_type=jnp.float32)                # [tm, tn]
        o_ref[...] = (acc_ref[...] + res).astype(o_ref.dtype)


def prepare_compensated_params(W, A, B_prime, *, dtype=jnp.bfloat16,
                               tn=None, tk=None):
    """Load-time prep (once per expert): transpose, bf16 cast, tile padding."""
    OUT, H = W.shape
    R = A.shape[0]
    assert A.shape == (R, H), A.shape
    assert B_prime.shape == (OUT, R), B_prime.shape

    if tk is None:
        tk = 128
        for cand in (1024, 512, 256):
            if H % cand == 0:
                tk = cand
                break
    if tn is None:
        tn = 128
        for cand in (512, 256):
            if OUT % cand == 0:
                tn = cand
                break
    # Keep >= 2 OUT tiles when possible so the "parallel" j axis can shard
    # across v7x's two TensorCores even when M fits in a single tile.
    while tn > 128 and _round_up(OUT, tn) // tn < 2:
        tn //= 2

    Hp = _round_up(H, tk)
    OUTp = _round_up(OUT, tn)
    Rp = _round_up(max(R, 1), 128)   # lane-pad rank only for the tiny bT/t operands

    wT = jnp.zeros((Hp, OUTp), dtype).at[:H, :OUT].set(jnp.asarray(W).T.astype(dtype))
    aT = jnp.zeros((Hp, R), dtype).at[:H, :].set(jnp.asarray(A).T.astype(dtype))
    bT = jnp.zeros((Rp, OUTp), dtype).at[:R, :OUT].set(jnp.asarray(B_prime).T.astype(dtype))

    return dict(wT=wT, aT=aT, bT=bT, dtype=dtype,
                H=H, OUT=OUT, R=R, Hp=Hp, OUTp=OUTp, Rp=Rp, tn=tn, tk=tk)


@functools.partial(
    jax.jit,
    static_argnames=("tm", "tn", "tk", "Rp", "out_dtype", "vmem_limit_bytes"))
def _forward_jit(xp, wT, aT, bT, *, tm, tn, tk, Rp, out_dtype, vmem_limit_bytes):
    Mp, Hp = xp.shape
    OUTp = wT.shape[1]
    R = aT.shape[1]

    # Low-rank projection computed ONCE per forward (tiny M*H*R matmul),
    # lane-padded to Rp for the kernel's finalize dot.
    t_small = jnp.dot(xp, aT, preferred_element_type=jnp.float32)       # [Mp, R]
    t = jnp.zeros((Mp, Rp), xp.dtype).at[:, :R].set(t_small.astype(xp.dtype))

    grid = (Mp // tm, OUTp // tn, Hp // tk)
    kernel = functools.partial(_compensated_kernel, tk=tk)

    return pl.pallas_call(
        kernel,
        out_shape=jax.ShapeDtypeStruct((Mp, OUTp), out_dtype),
        grid_spec=pltpu.PrefetchScalarGridSpec(
            num_scalar_prefetch=0,
            grid=grid,
            in_specs=[
                # x row slab: resident across j and k (block index constant).
                pl.BlockSpec((tm, Hp), lambda i, j, k: (i, 0)),
                # W.T tile: streamed over (k, j).
                pl.BlockSpec((tk, tn), lambda i, j, k: (k, j)),
                # t = x @ A.T: resident per M tile.
                pl.BlockSpec((tm, Rp), lambda i, j, k: (i, 0)),
                # B'.T tile: changes only with j.
                pl.BlockSpec((Rp, tn), lambda i, j, k: (0, j)),
            ],
            out_specs=pl.BlockSpec((tm, tn), lambda i, j, k: (i, j)),
            scratch_shapes=[pltpu.VMEM((tm, tn), jnp.float32)],   # f32 accumulator
        ),
        compiler_params=pltpu.CompilerParams(
            dimension_semantics=("parallel", "parallel", "arbitrary"),
            vmem_limit_bytes=vmem_limit_bytes),
    )(xp, wT, t, bT)


def compensated_forward(x, params, *, tm=None):
    """x: [M, H] (any float dtype).  Returns [M, OUT] in x.dtype."""
    M, H = x.shape
    assert H == params["H"], (H, params["H"])
    dtype = params["dtype"]
    tn, tk = params["tn"], params["tk"]
    Hp, OUTp, Rp, OUT = params["Hp"], params["OUTp"], params["Rp"], params["OUT"]
    out_itemsize = jnp.dtype(dtype).itemsize

    if tm is None:
        tm = min(512, _round_up(M, 16))
    tm = max(16, _round_up(tm, 16))

    def vmem_estimate(tm_):
        return (2 * tm_ * Hp * 2          # resident x slab (double-buffered bf16)
                + 2 * tm_ * Rp * 2        # t slab
                + 2 * tk * tn * 2         # W.T tiles
                + 2 * Rp * tn * 2         # B'.T tiles
                + 2 * tm_ * tn * out_itemsize   # output tiles
                + tm_ * tn * 4)           # f32 accumulator scratch

    # Keep the working set comfortably inside every generation's budget
    # (v7x: 64 MiB physical / 32 MiB scoped default; v5e: 16 MiB scoped default).
    VMEM_TARGET = 24 * 1024 * 1024
    while tm > 16 and vmem_estimate(tm) > VMEM_TARGET:
        tm = max(16, _round_up(tm // 2, 16))

    Mp = _round_up(M, tm)
    if M == Mp and H == Hp and x.dtype == dtype:
        xp = x                      # skip the per-forward padded copy when possible
    else:
        xp = jnp.zeros((Mp, Hp), dtype).at[:M, :H].set(x.astype(dtype))

    vmem_limit = int(min(max(int(vmem_estimate(tm) * 1.75), 32 * 1024 * 1024),
                         56 * 1024 * 1024))

    out = _forward_jit(xp, params["wT"], params["aT"], params["bT"],
                       tm=tm, tn=tn, tk=tk, Rp=Rp, out_dtype=dtype,
                       vmem_limit_bytes=vmem_limit)
    return out[:M, :OUT].astype(x.dtype)


if __name__ == "__main__":
    # Small shapes consistent with the module: batch=2, seq=8 -> M=16 tokens,
    # hidden=128, out=128, low-rank compensation rank=8.
    batch, seq, hidden, out_dim, rank = 2, 8, 128, 128, 8
    M = batch * seq

    key = jax.random.PRNGKey(0)
    kx, kw, ka, kb = jax.random.split(key, 4)

    x = jax.random.normal(kx, (M, hidden), dtype=jnp.float32)
    W = jax.random.normal(kw, (out_dim, hidden), dtype=jnp.float32) * 0.05      # base expert
    A = jax.random.normal(ka, (rank, hidden), dtype=jnp.float32) * 0.05         # A_{layer}_{expert}
    B_prime = jax.random.normal(kb, (out_dim, rank), dtype=jnp.float32) * 0.05  # B_prime_{layer}_{expert}

    # Load-time weight prep (transpose + bf16 cast + padding), once per expert.
    params = prepare_compensated_params(W, A, B_prime)

    out = jax.block_until_ready(compensated_forward(x, params))

    # Reference (pure JAX, f32 on bf16-rounded values), mirroring the torch
    # forward: model(x) + x @ A.T @ B'.T.
    to32 = lambda a: a.astype(jnp.bfloat16).astype(jnp.float32)
    xb, Wb, Ab, Bb = to32(x), to32(W), to32(A), to32(B_prime)
    t_ref = to32(xb @ Ab.T)           # kernel also rounds t to bf16
    ref = xb @ Wb.T + t_ref @ Bb.T

    assert out.shape == (M, out_dim), out.shape
    err = jnp.max(jnp.abs(out.astype(jnp.float32) - ref))
    assert jnp.allclose(out.astype(jnp.float32), ref, atol=3e-2, rtol=3e-2), (
        f"mismatch vs reference, max abs err = {err}")
    print("KERNEL_OK")
</pallas_src>

<mosaic_0001>
module attributes {stable_mosaic.version = 11 : i64} {
  func.func @_compensated_kernel(%arg0: i32, %arg1: i32, %arg2: i32, %arg3: memref<16x128xbf16, #tpu.memory_space<vmem>>, %arg4: memref<128x128xbf16, #tpu.memory_space<vmem>>, %arg5: memref<16x128xbf16, #tpu.memory_space<vmem>>, %arg6: memref<128x128xbf16, #tpu.memory_space<vmem>>, %arg7: memref<16x128xbf16, #tpu.memory_space<vmem>>, %arg8: memref<16x128xf32, #tpu.memory_space<vmem>>) attributes {dimension_semantics = [#tpu.dimension_semantics<parallel>, #tpu.dimension_semantics<parallel>, #tpu.dimension_semantics<arbitrary>], iteration_bounds = array<i64: 1, 1, 1>, scalar_prefetch = 0 : i64, scratch_operands = 1 : i64, tpu.core_type = #tpu.core_type<tc>, window_params = [{transform_indices = @transform_0, window_bounds = array<i64: 16, 128>}, {transform_indices = @transform_1, window_bounds = array<i64: 128, 128>}, {transform_indices = @transform_2, window_bounds = array<i64: 16, 128>}, {transform_indices = @transform_3, window_bounds = array<i64: 128, 128>}, {transform_indices = @transform_4, window_bounds = array<i64: 16, 128>}]} {
    %c0_i32 = arith.constant 0 : i32
    %0 = arith.cmpi eq, %arg2, %c0_i32 : i32
    %1 = arith.extui %0 : i1 to i32
    %c0_i32_0 = arith.constant 0 : i32
    %2 = arith.cmpi ne, %1, %c0_i32_0 : i32
    scf.if %2 {
      %cst_9 = arith.constant 0.000000e+00 : f32
      %15 = vector.broadcast %cst_9 : f32 to vector<16x128xf32>
      %c0_10 = arith.constant 0 : index
      %c0_11 = arith.constant 0 : index
      %16 = vector.load %arg8[%c0_10, %c0_11] : memref<16x128xf32, #tpu.memory_space<vmem>>, vector<16x128xf32>
      tpu.vector_store %arg8[%c0_10, %c0_11], %15 {strides = array<i32>} : memref<16x128xf32, #tpu.memory_space<vmem>>, vector<16x128xf32>,
    } else {
    }
    %c128_i32 = arith.constant 128 : i32
    %3 = arith.muli %arg2, %c128_i32 : i32
    %4 = tpu.assume_multiple %3, 128 : i32
    %c0 = arith.constant 0 : index
    %5 = arith.index_cast %4 : i32 to index
    %6 = vector.load %arg3[%c0, %5] : memref<16x128xbf16, #tpu.memory_space<vmem>>, vector<16x128xbf16>
    %c0_1 = arith.constant 0 : index
    %c0_2 = arith.constant 0 : index
    %7 = vector.load %arg8[%c0_1, %c0_2] : memref<16x128xf32, #tpu.memory_space<vmem>>, vector<16x128xf32>
    %c0_3 = arith.constant 0 : index
    %c0_4 = arith.constant 0 : index
    %8 = vector.load %arg4[%c0_3, %c0_4] : memref<128x128xbf16, #tpu.memory_space<vmem>>, vector<128x128xbf16>
    %cst = arith.constant dense<0.000000e+00> : vector<16x128xf32>
    %9 = tpu.matmul %6, %8, %cst {dimension_numbers = #tpu.dot_dimension_numbers<[1], [0], [0], [1], [0, 0, 1, 1], [], []>} : vector<16x128xbf16>, vector<128x128xbf16>, vector<16x128xf32> -> vector<16x128xf32>
    %10 = arith.addf %7, %9 : vector<16x128xf32>
    %c0_5 = arith.constant 0 : index
    %c0_6 = arith.constant 0 : index
    %11 = vector.load %arg8[%c0_5, %c0_6] : memref<16x128xf32, #tpu.memory_space<vmem>>, vector<16x128xf32>
    tpu.vector_store %arg8[%c0_5, %c0_6], %10 {strides = array<i32>} : memref<16x128xf32, #tpu.memory_space<vmem>>, vector<16x128xf32>,
    %c0_i32_7 = arith.constant 0 : i32
    %12 = arith.cmpi eq, %arg2, %c0_i32_7 : i32
    %13 = arith.extui %12 : i1 to i32
    %c0_i32_8 = arith.constant 0 : i32
    %14 = arith.cmpi ne, %13, %c0_i32_8 : i32
    scf.if %14 {
      %c0_9 = arith.constant 0 : index
      %c0_10 = arith.constant 0 : index
      %15 = vector.load %arg5[%c0_9, %c0_10] : memref<16x128xbf16, #tpu.memory_space<vmem>>, vector<16x128xbf16>
      %c0_11 = arith.constant 0 : index
      %c0_12 = arith.constant 0 : index
      %16 = vector.load %arg6[%c0_11, %c0_12] : memref<128x128xbf16, #tpu.memory_space<vmem>>, vector<128x128xbf16>
      %cst_13 = arith.constant dense<0.000000e+00> : vector<16x128xf32>
      %17 = tpu.matmul %15, %16, %cst_13 {dimension_numbers = #tpu.dot_dimension_numbers<[1], [0], [0], [1], [0, 0, 1, 1], [], []>} : vector<16x128xbf16>, vector<128x128xbf16>, vector<16x128xf32> -> vector<16x128xf32>
      %c0_14 = arith.constant 0 : index
      %c0_15 = arith.constant 0 : index
      %18 = vector.load %arg8[%c0_14, %c0_15] : memref<16x128xf32, #tpu.memory_space<vmem>>, vector<16x128xf32>
      %19 = arith.addf %18, %17 : vector<16x128xf32>
      %20 = arith.truncf %19 : vector<16x128xf32> to vector<16x128xbf16>
      %c0_16 = arith.constant 0 : index
      %c0_17 = arith.constant 0 : index
      %21 = vector.load %arg7[%c0_16, %c0_17] : memref<16x128xbf16, #tpu.memory_space<vmem>>, vector<16x128xbf16>
      tpu.vector_store %arg7[%c0_16, %c0_17], %20 {strides = array<i32>} : memref<16x128xbf16, #tpu.memory_space<vmem>>, vector<16x128xbf16>,
    } else {
    }
    return
  }
  func.func @transform_0(%arg0: i32, %arg1: i32, %arg2: i32) -> (i32, i32) {
    %c0_i32 = arith.constant 0 : i32
    %c0_i32_0 = arith.constant 0 : i32
    return %arg0, %c0_i32 : i32, i32
  }
  func.func @transform_1(%arg0: i32, %arg1: i32, %arg2: i32) -> (i32, i32) {
    %c0_i32 = arith.constant 0 : i32
    return %arg2, %arg1 : i32, i32
  }
  func.func @transform_2(%arg0: i32, %arg1: i32, %arg2: i32) -> (i32, i32) {
    %c0_i32 = arith.constant 0 : i32
    %c0_i32_0 = arith.constant 0 : i32
    return %arg0, %c0_i32 : i32, i32
  }
  func.func @transform_3(%arg0: i32, %arg1: i32, %arg2: i32) -> (i32, i32) {
    %c0_i32 = arith.constant 0 : i32
    %c0_i32_0 = arith.constant 0 : i32
    return %c0_i32, %arg1 : i32, i32
  }
  func.func @transform_4(%arg0: i32, %arg1: i32, %arg2: i32) -> (i32, i32) {
    %c0_i32 = arith.constant 0 : i32
    return %arg0, %arg1 : i32, i32
  }
}

</mosaic_0001>

<llo_original>
// kernel: _forward_jit.1
$region0: #{_forward_jit.1}
  #allocation0 [shape = 'u32[]', space=smem, size = 0x4, offset = 0x4, fixed_abs, tag = 'smem constant byte address 0x4 - core index']
  #allocation1 [shape = 'u32[144,128]{1,0:T(1,128)}', space=vmem, size = 0x12000, scoped, tag = 'internal scratch']
  #allocation2 [shape = 'f32[16,128]{1,0:T(8,128)}', space=vmem, size = 0x2000, scoped, tag = 'scratch operand']
  %s0 = inlined_call_operand.vmem [shape: bf16[16,128], index: 0, kind: input, shape index: {}]
  %s1 = inlined_call_operand.hbm [shape: bf16[128,128], index: 1, kind: input, shape index: {}]
  %s2 = inlined_call_operand.vmem [shape: bf16[16,128], index: 2, kind: input, shape index: {}]
  %s3 = inlined_call_operand.hbm [shape: bf16[128,128], index: 3, kind: input, shape index: {}]
  %s4 = inlined_call_operand.hbm [shape: bf16[16,128], index: 4, kind: output, shape index: {}]
  %s5 = sld [smem:[#allocation0]]
  $region42: #{_forward_jit.1} parent=0
    _
  %s7 = ssub.s32 1, %s5
  %s8 = scalar_select 0, %s7, %s5
  $region1: #{_forward_jit.1} parent=0
    #allocation3 [shape = 'u8[32768]{0}', space=vmem, size = 0x8000, scoped, tag = 'input window, operand 1, single buffered']
    #allocation4 [shape = 's32[1]{0}', space=sflag, size = 0x4, scoped, tag = 'scoped memory for _forward_jit.1']
    #allocation5 [shape = 's32[1]{0}', space=sflag, size = 0x4, scoped, tag = 'scoped memory for _forward_jit.1']
    #allocation6 [shape = 'u8[32768]{0}', space=vmem, size = 0x8000, scoped, tag = 'input window, operand 3, single buffered']
    #allocation7 [shape = 's32[1]{0}', space=sflag, size = 0x4, scoped, tag = 'scoped memory for _forward_jit.1']
    #allocation8 [shape = 'u8[4096]{0}', space=vmem, size = 0x1000, scoped, tag = 'output window, operand 0, single buffered']
    %9 = vsyncpa [#allocation4], 0
    %10 = vsyncpa [#allocation7], 0
    %11 = vsyncpa [#allocation5], 0
    // Predicated region
    $region2: #{_forward_jit.1} parent=1 // pred_check
      _
    $region3: #{_forward_jit.1} parent=1 // pred_check_branch
      %13 = sbr.rel (0) target = $region5
    $region4: #{_forward_jit.1} parent=1 // pred_region
      _
    $region5: #{_forward_jit.1} parent=1 // pred_fallthru
      _
    // Predicated region
    $region6: #{_forward_jit.1} parent=1 // pred_check
      _
    $region7: #{_forward_jit.1} parent=1 // pred_check_branch
      %15 = sbr.rel (0) target = $region9
    $region8: #{_forward_jit.1} parent=1 // pred_region
      %s17 = ssub.s32 1024, 1024
      %18 = vsyncadd [#allocation4], %s17
      %s19 = sshll.u32 [#allocation3], 4
      %s20 = int_to_ptr.vmem [resolvable:$true] %s19
      %25 = dma.hbm_to_vmem [thread:$0]  %s1, 1024, %s20, [#allocation4], 64, 64, 4
    $region9: #{_forward_jit.1} parent=1 // pred_fallthru
      _
    // Predicated region
    $region10: #{_forward_jit.1} parent=1 // pred_check
      _
    $region11: #{_forward_jit.1} parent=1 // pred_check_branch
      %27 = sbr.rel (0) target = $region13
    $region12: #{_forward_jit.1} parent=1 // pred_region
      _
    $region13: #{_forward_jit.1} parent=1 // pred_fallthru
      _
    // Predicated region
    $region14: #{_forward_jit.1} parent=1 // pred_check
      _
    $region15: #{_forward_jit.1} parent=1 // pred_check_branch
      %29 = sbr.rel (0) target = $region17
    $region16: #{_forward_jit.1} parent=1 // pred_region
      %s31 = ssub.s32 1024, 1024
      %32 = vsyncadd [#allocation7], %s31
      %s33 = sshll.u32 [#allocation6], 4
      %s34 = int_to_ptr.vmem [resolvable:$true] %s33
      %39 = dma.hbm_to_vmem [thread:$0]  %s3, 1024, %s34, [#allocation7], 64, 64, 4
    $region17: #{_forward_jit.1} parent=1 // pred_fallthru
      _
    // Predicated region
    $region18: #{_forward_jit.1} parent=1 // pred_check
      _
    $region19: #{_forward_jit.1} parent=1 // pred_check_branch
      %41 = sbr.rel (0) target = $region21
    $region20: #{_forward_jit.1} parent=1 // pred_region
      %42 = dma.done [#allocation4], 1024
    $region21: #{_forward_jit.1} parent=1 // pred_fallthru
      _
    // Predicated region
    $region22: #{_forward_jit.1} parent=1 // pred_check
      _
    $region23: #{_forward_jit.1} parent=1 // pred_check_branch
      %44 = sbr.rel (0) target = $region25
    $region24: #{_forward_jit.1} parent=1 // pred_region
      %45 = dma.done [#allocation7], 1024
    $region25: #{_forward_jit.1} parent=1 // pred_fallthru
      _
    %p47 = scmp.eq.s32.totalorder 0, 0
    // Predicated region
    $region26: #{_forward_jit.1} parent=1 // pred_check
      %p48 = pneg %p47
    $region27: #{_forward_jit.1} parent=1 // pred_check_branch
      %50 = sbr.rel (%p48) target = $region29
    $region28: #{_forward_jit.1} parent=1 // pred_region
      %51 = vst [vmem:[#allocation2] sm:$0xff] 0.0
      %52 = vst [vmem:[#allocation2 + $0x8] sm:$0xff] 0.0
    $region29: #{_forward_jit.1} parent=1 // pred_fallthru
      _
    %s53 = smul.u32 0, 128
    %s54 = sshra.s32 %s53, 7
    %s55 = sand.u32 %s53, 127
    %s56 = smul.addr %s54, 4
    %s57 = scalar_lea.vmem %s0, %s56
    %v58 = vld [vmem:[%s57] sm:$0xf]
    %v59 = vld [vmem:[%s57 + $0x4] sm:$0xf]
    %v60 = vld [vmem:[#allocation2] sm:$0xff]
    %v61 = vld [vmem:[#allocation2 + $0x8] sm:$0xff]
    %v62 = vld [vmem:[#allocation3] sm:$0xf]
    %v63 = vld [vmem:[#allocation3 + $0x4] sm:$0xf]
    %v64 = vld [vmem:[#allocation3 + $0x8] sm:$0xf]
    %v65 = vld [vmem:[#allocation3 + $0xc] sm:$0xf]
    %v66 = vld [vmem:[#allocation3 + $0x10] sm:$0xf]
    %v67 = vld [vmem:[#allocation3 + $0x14] sm:$0xf]
    %v68 = vld [vmem:[#allocation3 + $0x18] sm:$0xf]
    %v69 = vld [vmem:[#allocation3 + $0x1c] sm:$0xf]
    %v70 = vld [vmem:[#allocation3 + $0x20] sm:$0xf]
    %v71 = vld [vmem:[#allocation3 + $0x24] sm:$0xf]
    %v72 = vld [vmem:[#allocation3 + $0x28] sm:$0xf]
    %v73 = vld [vmem:[#allocation3 + $0x2c] sm:$0xf]
    %v74 = vld [vmem:[#allocation3 + $0x30] sm:$0xf]
    %v75 = vld [vmem:[#allocation3 + $0x34] sm:$0xf]
    %v76 = vld [vmem:[#allocation3 + $0x38] sm:$0xf]
    %v77 = vld [vmem:[#allocation3 + $0x3c] sm:$0xf]
    %v80 = vunpack.c.l.b16 %v58
    %v81 = vunpack.c.l.b16 %v59
    %v82 = vpack.c.b16 %v81, %v80
    %v100 = vunpack.c.l.b16 %v62
    %v101 = vunpack.c.l.b16 %v63
    %v102 = vunpack.c.l.b16 %v64
    %v103 = vunpack.c.l.b16 %v65
    %v104 = vunpack.c.l.b16 %v66
    %v105 = vunpack.c.l.b16 %v67
    %v106 = vunpack.c.l.b16 %v68
    %v107 = vunpack.c.l.b16 %v69
    %v108 = vunpack.c.l.b16 %v70
    %v109 = vunpack.c.l.b16 %v71
    %v110 = vunpack.c.l.b16 %v72
    %v111 = vunpack.c.l.b16 %v73
    %v112 = vunpack.c.l.b16 %v74
    %v113 = vunpack.c.l.b16 %v75
    %v114 = vunpack.c.l.b16 %v76
    %v115 = vunpack.c.l.b16 %v77
    %v116 = vpack.c.b16 %v101, %v100
    %v117 = vpack.c.b16 %v103, %v102
    %v118 = vpack.c.b16 %v105, %v104
    %v119 = vpack.c.b16 %v107, %v106
    %v120 = vpack.c.b16 %v109, %v108
    %v121 = vpack.c.b16 %v111, %v110
    %v122 = vpack.c.b16 %v113, %v112
    %v123 = vpack.c.b16 %v115, %v114
    %132 = vmatprep.subr.bf16.mxu0 0
    %133 = vmatpush1.bf16.msra.mxu0 %v116
    %134 = vmatprep.subr.bf16.mxu0 0
    %135 = vmatpush1.bf16.msra.mxu0 %v117
    %136 = vmatprep.subr.bf16.mxu0 0
    %137 = vmatpush1.bf16.msra.mxu0 %v118
    %138 = vmatprep.subr.bf16.mxu0 0
    %139 = vmatpush1.bf16.msra.mxu0 %v119
    %140 = vmatprep.subr.bf16.mxu0 0
    %141 = vmatpush1.bf16.msra.mxu0 %v120
    %142 = vmatprep.subr.bf16.mxu0 0
    %143 = vmatpush1.bf16.msra.mxu0 %v121
    %144 = vmatprep.subr.bf16.mxu0 0
    %145 = vmatpush1.bf16.msra.mxu0 %v122
    %146 = vmatprep.subr.bf16.mxu0 0
    %147 = vmatpush1.bf16.msra.mxu0 %v123
    %148 = vmatprep.subr.bf16.mxu0 0
    %149 = vmatpush1.bf16.msra.mxu0 0
    %150 = vmatprep.subr.bf16.mxu0 0
    %151 = vmatpush1.bf16.msra.mxu0 0
    %152 = vmatprep.subr.bf16.mxu0 0
    %153 = vmatpush1.bf16.msra.mxu0 0
    %154 = vmatprep.subr.bf16.mxu0 0
    %155 = vmatpush1.bf16.msra.mxu0 0
    %156 = vmatprep.subr.bf16.mxu0 0
    %157 = vmatpush1.bf16.msra.mxu0 0
    %158 = vmatprep.subr.bf16.mxu0 0
    %159 = vmatpush1.bf16.msra.mxu0 0
    %160 = vmatprep.subr.bf16.mxu0 0
    %161 = vmatpush1.bf16.msra.mxu0 0
    %162 = vmatprep.subr.bf16.mxu0 0
    %163 = vmatpush1.bf16.msra.mxu0 0
    %164 = vmatprep.mubr.bf16.mxu0 0
    %165 = vmatmul.mubr.bf16.gmra.mrb[0].mxu0 %v82
    %v166 = vpop.f32.mrb[0].mxu0
    %v167 = vadd.f32 0.0, %v166
    %v168 = vpop.f32.mrb[0].mxu0
    %v169 = vpop.f32.mrb[0].mxu0
    %v170 = vadd.f32 0.0, %v169
    %v171 = vpop.f32.mrb[0].mxu0
    %172 = vdwg.mxu0
    %v173 = vadd.f32 %v60, %v167
    %v174 = vadd.f32 %v61, %v170
    %175 = vst [vmem:[#allocation2] sm:$0xff] %v173
    %176 = vst [vmem:[#allocation2 + $0x8] sm:$0xff] %v174
    // Predicated region
    $region30: #{_forward_jit.1} parent=1 // pred_check
      %p177 = pneg %p47
    $region31: #{_forward_jit.1} parent=1 // pred_check_branch
      %179 = sbr.rel (%p177) target = $region33
    $region32: #{_forward_jit.1} parent=1 // pred_region
      %v180 = vld [vmem:[%s2] sm:$0xf]
      %v181 = vld [vmem:[%s2 + $0x4] sm:$0xf]
      %v182 = vld [vmem:[#allocation6] sm:$0xf]
      %v183 = vld [vmem:[#allocation6 + $0x4] sm:$0xf]
      %v184 = vld [vmem:[#allocation6 + $0x8] sm:$0xf]
      %v185 = vld [vmem:[#allocation6 + $0xc] sm:$0xf]
      %v186 = vld [vmem:[#allocation6 + $0x10] sm:$0xf]
      %v187 = vld [vmem:[#allocation6 + $0x14] sm:$0xf]
      %v188 = vld [vmem:[#allocation6 + $0x18] sm:$0xf]
      %v189 = vld [vmem:[#allocation6 + $0x1c] sm:$0xf]
      %v190 = vld [vmem:[#allocation6 + $0x20] sm:$0xf]
      %v191 = vld [vmem:[#allocation6 + $0x24] sm:$0xf]
      %v192 = vld [vmem:[#allocation6 + $0x28] sm:$0xf]
      %v193 = vld [vmem:[#allocation6 + $0x2c] sm:$0xf]
      %v194 = vld [vmem:[#allocation6 + $0x30] sm:$0xf]
      %v195 = vld [vmem:[#allocation6 + $0x34] sm:$0xf]
      %v196 = vld [vmem:[#allocation6 + $0x38] sm:$0xf]
      %v197 = vld [vmem:[#allocation6 + $0x3c] sm:$0xf]
      %v200 = vunpack.c.l.b16 %v180
      %v201 = vunpack.c.l.b16 %v181
      %v202 = vpack.c.b16 %v201, %v200
      %v220 = vunpack.c.l.b16 %v182
      %v221 = vunpack.c.l.b16 %v183
      %v222 = vunpack.c.l.b16 %v184
      %v223 = vunpack.c.l.b16 %v185
      %v224 = vunpack.c.l.b16 %v186
      %v225 = vunpack.c.l.b16 %v187
      %v226 = vunpack.c.l.b16 %v188
      %v227 = vunpack.c.l.b16 %v189
      %v228 = vunpack.c.l.b16 %v190
      %v229 = vunpack.c.l.b16 %v191
      %v230 = vunpack.c.l.b16 %v192
      %v231 = vunpack.c.l.b16 %v193
      %v232 = vunpack.c.l.b16 %v194
      %v233 = vunpack.c.l.b16 %v195
      %v234 = vunpack.c.l.b16 %v196
      %v235 = vunpack.c.l.b16 %v197
      %v236 = vpack.c.b16 %v221, %v220
      %v237 = vpack.c.b16 %v223, %v222
      %v238 = vpack.c.b16 %v225, %v224
      %v239 = vpack.c.b16 %v227, %v226
      %v240 = vpack.c.b16 %v229, %v228
      %v241 = vpack.c.b16 %v231, %v230
      %v242 = vpack.c.b16 %v233, %v232
      %v243 = vpack.c.b16 %v235, %v234
      %252 = vmatprep.subr.bf16.mxu0 0
      %253 = vmatpush1.bf16.msra.mxu0 %v236
      %254 = vmatprep.subr.bf16.mxu0 0
      %255 = vmatpush1.bf16.msra.mxu0 %v237
      %256 = vmatprep.subr.bf16.mxu0 0
      %257 = vmatpush1.bf16.msra.mxu0 %v238
      %258 = vmatprep.subr.bf16.mxu0 0
      %259 = vmatpush1.bf16.msra.mxu0 %v239
      %260 = vmatprep.subr.bf16.mxu0 0
      %261 = vmatpush1.bf16.msra.mxu0 %v240
      %262 = vmatprep.subr.bf16.mxu0 0
      %263 = vmatpush1.bf16.msra.mxu0 %v241
      %264 = vmatprep.subr.bf16.mxu0 0
      %265 = vmatpush1.bf16.msra.mxu0 %v242
      %266 = vmatprep.subr.bf16.mxu0 0
      %267 = vmatpush1.bf16.msra.mxu0 %v243
      %268 = vmatprep.subr.bf16.mxu0 0
      %269 = vmatpush1.bf16.msra.mxu0 0
      %270 = vmatprep.subr.bf16.mxu0 0
      %271 = vmatpush1.bf16.msra.mxu0 0
      %272 = vmatprep.subr.bf16.mxu0 0
      %273 = vmatpush1.bf16.msra.mxu0 0
      %274 = vmatprep.subr.bf16.mxu0 0
      %275 = vmatpush1.bf16.msra.mxu0 0
      %276 = vmatprep.subr.bf16.mxu0 0
      %277 = vmatpush1.bf16.msra.mxu0 0
      %278 = vmatprep.subr.bf16.mxu0 0
      %279 = vmatpush1.bf16.msra.mxu0 0
      %280 = vmatprep.subr.bf16.mxu0 0
      %281 = vmatpush1.bf16.msra.mxu0 0
      %282 = vmatprep.subr.bf16.mxu0 0
      %283 = vmatpush1.bf16.msra.mxu0 0
      %284 = vmatprep.mubr.bf16.mxu0 0
      %285 = vmatmul.mubr.bf16.gmra.mrb[0].mxu0 %v202
      %v286 = vpop.f32.mrb[0].mxu0
      %v287 = vadd.f32 0.0, %v286
      %v288 = vpop.f32.mrb[0].mxu0
      %v289 = vpop.f32.mrb[0].mxu0
      %v290 = vadd.f32 0.0, %v289
      %v291 = vpop.f32.mrb[0].mxu0
      %292 = vdwg.mxu0
      %v293 = vld [vmem:[#allocation2] sm:$0xff]
      %v294 = vld [vmem:[#allocation2 + $0x8] sm:$0xff]
      %v295 = vadd.f32 %v293, %v287
      %v296 = vadd.f32 %v294, %v290
      %v297 = vpack.c.bf16 %v296, %v295
      %v299 = vunpack.c.l.b16 %v297
      %v300 = vunpack.c.h.b16 %v297
      %v301 = vpack.c.b16 %v299, %v299
      %v302 = vpack.c.b16 %v300, %v300
      %305 = vst [vmem:[#allocation8] sm:$0xf] %v301
      %306 = vst [vmem:[#allocation8 + $0x4] sm:$0xf] %v302
    $region33: #{_forward_jit.1} parent=1 // pred_fallthru
      _
    // Predicated region
    $region34: #{_forward_jit.1} parent=1 // pred_check
      _
    $region35: #{_forward_jit.1} parent=1 // pred_check_branch
      %308 = sbr.rel (0) target = $region37
    $region36: #{_forward_jit.1} parent=1 // pred_region
      %s310 = ssub.s32 128, 128
      %311 = vsyncadd [#allocation5], %s310
      %s312 = sshll.u32 [#allocation8], 4
      %s313 = int_to_ptr.vmem [resolvable:$true] %s312
      %318 = dma.vmem_to_hbm [thread:$0]  %s313, 128, %s4, [#allocation5], 64, 64, 4
    $region37: #{_forward_jit.1} parent=1 // pred_fallthru
      _
    // Predicated region
    $region38: #{_forward_jit.1} parent=1 // pred_check
      _
    $region39: #{_forward_jit.1} parent=1 // pred_check_branch
      %320 = sbr.rel (0) target = $region41
    $region40: #{_forward_jit.1} parent=1 // pred_region
      %321 = dma.done [#allocation5], 128
    $region41: #{_forward_jit.1} parent=1 // pred_fallthru
      _
    %322 = vsyncpa [#allocation4], 1
    %323 = vsyncpa [#allocation7], 1
    %324 = vsyncpa [#allocation5], 1

</llo_original>
